<compile_context>
chip_gen: v7x
topology: tpu7x:2x2x1
jax: 0.10.0
libtpu: 0.0.40
codegen_flags: <defaults>
</compile_context>

<pallas_src>
import jax
import jax.numpy as jnp
from jax.experimental import pallas as pl
from jax.experimental.pallas import tpu as pltpu

# Regularization / nonlinearity constants from the PyTorch module.
LAMBDA1 = 0.075
LAMBDA2 = 0.2
LAMBDA3 = 0.05
B_CONST = 20.0 / 3.0


def mindy_kernel(xp_ref, xn_ref, mu_ref, w_ref, da_ref,
                 xpred_ref, j_ref, rhs_ref):
    """One time-tile of the MINDy forward pass.

    xp_ref:    (P, tT)  f32   X0[:, :-1] tile (zero-padded tail)
    xn_ref:    (P, tT)  f32   X0[:, 1:]  tile (zero-padded tail)
    mu_ref:    (MP, tT) bf16  mu0[:, :-1] tile, rows zero-padded to MP
    w_ref:     (P, K)   bf16  [beta | 0 | W_S + W_1 W_2^T]   (grid-resident)
    da_ref:    (P, 2)   f32   [Decay | alpha]                (grid-resident)
    xpred_ref: (P, tT)  f32   Xpred tile (output)
    j_ref:     (1, 1)   f32   0.5 * sum((Xn - Xpred)^2) accumulator (output)
    rhs_ref:   (K, tT)  bf16  VMEM scratch: fused RHS [mu ; psi]
    """
    t = pl.program_id(0)

    @pl.when(t == 0)
    def _init():
        j_ref[...] = jnp.zeros_like(j_ref)

    xp = xp_ref[...]
    da = da_ref[...]
    decay = da[:, 0:1]
    alpha = da[:, 1:2]

    # psi(x) = sqrt(a^2 + (b x + .5)^2) - sqrt(a^2 + (b x - .5)^2); psi(0) = 0,
    # so zero-padded tail columns contribute nothing to Xpred or J.
    a2 = alpha * alpha
    bx = B_CONST * xp
    psi = jnp.sqrt(a2 + (bx + 0.5) ** 2) - jnp.sqrt(a2 + (bx - 0.5) ** 2)

    # Fused RHS [mu ; psi]: one bf16 MXU matmul yields W @ psi + beta @ mu.
    mp = mu_ref.shape[0]
    rhs_ref[:mp, :] = mu_ref[...]
    rhs_ref[mp:, :] = psi.astype(rhs_ref.dtype)
    xadd = jnp.dot(w_ref[...], rhs_ref[...],
                   preferred_element_type=jnp.float32)

    # Xpred = (1 - Decay) * Xp + W @ psi + beta @ mu
    xpred = (1.0 - decay) * xp + xadd
    xpred_ref[...] = xpred

    resid = xn_ref[...] - xpred
    j_ref[...] += 0.5 * jnp.sum(resid * resid, keepdims=True)


def mindy_forward(X0, mu0, params, *, time_tile=512):
    """Pallas-backed equivalent of mindy.forward(X0, mu0).

    Returns (X0[:, 1:], Xpred, J) with J a scalar float32.
    """
    W_S, W_1, W_2, Decay, alpha, beta = params
    P, nT = X0.shape
    I = mu0.shape[0]
    T1 = nT - 1
    f32 = jnp.float32
    bf16 = jnp.bfloat16

    # ---- time tiling: lane-dense (multiple of 128) tiles ---------------------
    assert time_tile % 128 == 0 and time_tile > 0
    t1_128 = ((T1 + 127) // 128) * 128
    tT = min(int(time_tile), t1_128)
    n_tiles = pl.cdiv(T1, tT)
    Tpad = n_tiles * tT

    # mu/beta block padded to a full bf16 sublane tile (16 rows).
    MP = max(16, ((I + 15) // 16) * 16)
    K = MP + P

    # ---- parameter-only work hoisted out of the kernel -----------------------
    W = W_S + W_1 @ W_2.T                                              # (P, P)
    wsb = jnp.concatenate(
        [beta, jnp.zeros((P, MP - I), f32), W], axis=1).astype(bf16)   # (P, K)
    da = jnp.stack([Decay, alpha], axis=1).astype(f32)                 # (P, 2)
    reg = (LAMBDA1 * jnp.sum(jnp.abs(W_S))
           + LAMBDA2 * jnp.trace(jnp.abs(W_S))
           + LAMBDA3 * (jnp.sum(jnp.abs(W_1)) + jnp.sum(jnp.abs(W_2))))

    # ---- shifted / padded time series (shift absorbed by the DMA layout) -----
    Xp = jnp.pad(X0[:, :T1], ((0, 0), (0, Tpad - T1)))
    Xn = jnp.pad(X0[:, 1:], ((0, 0), (0, Tpad - T1)))
    mu = jnp.pad(mu0[:, :T1].astype(bf16), ((0, MP - I), (0, Tpad - T1)))

    grid_spec = pltpu.PrefetchScalarGridSpec(
        num_scalar_prefetch=0,
        grid=(n_tiles,),
        in_specs=[
            pl.BlockSpec((P, tT), lambda t: (0, t)),    # Xp tile
            pl.BlockSpec((P, tT), lambda t: (0, t)),    # Xn tile
            pl.BlockSpec((MP, tT), lambda t: (0, t)),   # mu tile
            pl.BlockSpec((P, K), lambda t: (0, 0)),     # fused weight slab
            pl.BlockSpec((P, 2), lambda t: (0, 0)),     # [Decay | alpha]
        ],
        out_specs=(
            pl.BlockSpec((P, tT), lambda t: (0, t)),    # Xpred tile
            pl.BlockSpec((1, 1), lambda t: (0, 0)),     # J accumulator
        ),
        scratch_shapes=[pltpu.VMEM((K, tT), bf16)],
    )

    # Double-buffered tiles + resident weights + RHS scratch, with headroom;
    # capped at v7x's 64 MiB physical VMEM.
    vmem_bytes = (2 * (2 * P * tT * 4 + MP * tT * 2 + P * tT * 4)
                  + P * K * 2 + P * 2 * 4 + K * tT * 2 + (4 << 20))
    vmem_bytes = int(min(max(vmem_bytes, 16 << 20), 64 << 20))

    cost = pl.CostEstimate(
        flops=2 * P * K * Tpad + 14 * P * Tpad,
        transcendentals=2 * P * Tpad,
        bytes_accessed=4 * (3 * P * Tpad + 1) + 2 * (MP * Tpad + P * K),
    )

    xpred_pad, j = pl.pallas_call(
        mindy_kernel,
        grid_spec=grid_spec,
        out_shape=(
            jax.ShapeDtypeStruct((P, Tpad), f32),
            jax.ShapeDtypeStruct((1, 1), f32),
        ),
        compiler_params=pltpu.CompilerParams(
            dimension_semantics=("arbitrary",),   # J accumulates over time
            vmem_limit_bytes=vmem_bytes,
        ),
        cost_estimate=cost,
    )(Xp, Xn, mu, wsb, da)

    Xpred = xpred_pad[:, :T1]
    J = j[0, 0] + reg
    return X0[:, 1:], Xpred, J


def init_params(key, nparcel, ninput, scale=0.01):
    """Deterministic parameter init mirroring the PyTorch __init__ shapes."""
    low_rank = int(nparcel / 3)
    k = jax.random.split(key, 6)
    W_S = jax.random.normal(k[0], (nparcel, nparcel), jnp.float32) * scale
    W_1 = jax.random.normal(k[1], (nparcel, low_rank), jnp.float32) * scale
    W_2 = jax.random.normal(k[2], (nparcel, low_rank), jnp.float32) * scale
    Decay = 5.0 + jax.random.normal(k[3], (nparcel,), jnp.float32) * scale * 50
    alpha = 5.0 + jax.random.normal(k[4], (nparcel,), jnp.float32) * scale * 5
    beta = jax.random.normal(k[5], (nparcel, ninput), jnp.float32) * scale
    return (W_S, W_1, W_2, Decay, alpha, beta)


def _reference_forward(X0, mu0, params):
    """Pure-JAX reference for validation."""
    W_S, W_1, W_2, Decay, alpha, beta = params
    Xp, Xn, mup = X0[:, :-1], X0[:, 1:], mu0[:, :-1]
    W = W_S + W_1 @ W_2.T
    a = alpha[:, None]
    psi = (jnp.sqrt(a ** 2 + (B_CONST * Xp + 0.5) ** 2)
           - jnp.sqrt(a ** 2 + (B_CONST * Xp - 0.5) ** 2))
    lambdas = (LAMBDA1 * jnp.sum(jnp.abs(W_S))
               + LAMBDA2 * jnp.trace(jnp.abs(W_S))
               + LAMBDA3 * (jnp.sum(jnp.abs(W_1)) + jnp.sum(jnp.abs(W_2))))
    Xpred = Xp + W @ psi - Decay[:, None] * Xp + beta @ mup
    J = 0.5 * jnp.sum((Xn - Xpred) ** 2) + lambdas
    return Xn, Xpred, J


if __name__ == "__main__":
    # Small deterministic example; nT chosen so T1 = 299 is NOT a multiple of
    # the 128-wide time tile (exercises multi-tile J accumulation + ragged tail).
    nparcel, ninput, nT = 12, 3, 300   # low_rank = 4

    key = jax.random.PRNGKey(0)
    kx, kmu, kp = jax.random.split(key, 3)
    X0 = jax.random.normal(kx, (nparcel, nT), jnp.float32)
    mu0 = jax.random.normal(kmu, (ninput, nT), jnp.float32)
    params = init_params(kp, nparcel, ninput)

    fwd = jax.jit(mindy_forward, static_argnames=("time_tile",))
    Xn, Xpred, J = jax.block_until_ready(fwd(X0, mu0, params, time_tile=128))

    # sanity check against a pure-JAX reference (bf16 MXU operands -> loose tol)
    Xn_r, Xpred_r, J_r = _reference_forward(X0, mu0, params)
    assert Xn.shape == (nparcel, nT - 1) and Xpred.shape == (nparcel, nT - 1)
    assert jnp.allclose(Xn, Xn_r)
    assert jnp.allclose(Xpred, Xpred_r, atol=2e-3, rtol=2e-3), float(
        jnp.max(jnp.abs(Xpred - Xpred_r)))
    assert jnp.allclose(J, J_r, rtol=5e-3), (float(J), float(J_r))

    print("KERNEL_OK")
</pallas_src>

<mosaic_0001>
module attributes {stable_mosaic.version = 11 : i64} {
  func.func @mindy_kernel(%arg0: i32, %arg1: memref<12x128xf32, #tpu.memory_space<vmem>>, %arg2: memref<12x128xf32, #tpu.memory_space<vmem>>, %arg3: memref<16x128xbf16, #tpu.memory_space<vmem>>, %arg4: memref<12x28xbf16, #tpu.memory_space<vmem>>, %arg5: memref<12x2xf32, #tpu.memory_space<vmem>>, %arg6: memref<12x128xf32, #tpu.memory_space<vmem>>, %arg7: memref<1x1xf32, #tpu.memory_space<vmem>>, %arg8: memref<28x128xbf16, #tpu.memory_space<vmem>>) attributes {dimension_semantics = [#tpu.dimension_semantics<arbitrary>], iteration_bounds = array<i64: 3>, scalar_prefetch = 0 : i64, scratch_operands = 1 : i64, tpu.core_type = #tpu.core_type<tc>, window_params = [{transform_indices = @transform_0, window_bounds = array<i64: 12, 128>}, {transform_indices = @transform_1, window_bounds = array<i64: 12, 128>}, {transform_indices = @transform_2, window_bounds = array<i64: 16, 128>}, {pipeline_mode = #tpu.pipeline_mode<synchronous>, transform_indices = @transform_3, window_bounds = array<i64: 12, 28>}, {pipeline_mode = #tpu.pipeline_mode<synchronous>, transform_indices = @transform_4, window_bounds = array<i64: 12, 2>}, {transform_indices = @transform_5, window_bounds = array<i64: 12, 128>}, {pipeline_mode = #tpu.pipeline_mode<synchronous>, transform_indices = @transform_6, window_bounds = array<i64: 1, 1>}]} {
    %c0_i32 = arith.constant 0 : i32
    %0 = arith.cmpi eq, %arg0, %c0_i32 : i32
    %1 = arith.extui %0 : i1 to i32
    %c0_i32_0 = arith.constant 0 : i32
    %2 = arith.cmpi ne, %1, %c0_i32_0 : i32
    scf.if %2 {
      %cst_27 = arith.constant 0.000000e+00 : f32
      %49 = vector.broadcast %cst_27 : f32 to vector<1x1xf32>
      %c0_28 = arith.constant 0 : index
      %c0_29 = arith.constant 0 : index
      %50 = vector.load %arg7[%c0_28, %c0_29] : memref<1x1xf32, #tpu.memory_space<vmem>>, vector<1x1xf32>
      tpu.vector_store %arg7[%c0_28, %c0_29], %49 {strides = array<i32>} : memref<1x1xf32, #tpu.memory_space<vmem>>, vector<1x1xf32>,
    } else {
    }
    %c0 = arith.constant 0 : index
    %c0_1 = arith.constant 0 : index
    %3 = vector.load %arg1[%c0, %c0_1] : memref<12x128xf32, #tpu.memory_space<vmem>>, vector<12x128xf32>
    %c0_2 = arith.constant 0 : index
    %c0_3 = arith.constant 0 : index
    %4 = vector.load %arg5[%c0_2, %c0_3] : memref<12x2xf32, #tpu.memory_space<vmem>>, vector<12x2xf32>
    %5 = vector.extract_strided_slice %4 {offsets = [0, 0], sizes = [12, 1], strides = [1, 1]} : vector<12x2xf32> to vector<12x1xf32>
    %6 = vector.extract_strided_slice %4 {offsets = [0, 1], sizes = [12, 1], strides = [1, 1]} : vector<12x2xf32> to vector<12x1xf32>
    %7 = arith.mulf %6, %6 : vector<12x1xf32>
    %cst = arith.constant 6.66666651 : f32
    %8 = vector.broadcast %cst : f32 to vector<12x128xf32>
    %9 = arith.mulf %8, %3 : vector<12x128xf32>
    %cst_4 = arith.constant 5.000000e-01 : f32
    %10 = vector.broadcast %cst_4 : f32 to vector<12x128xf32>
    %11 = arith.addf %9, %10 : vector<12x128xf32>
    %12 = arith.mulf %11, %11 : vector<12x128xf32>
    %13 = vector.broadcast %7 : vector<12x1xf32> to vector<12x128xf32>
    %14 = arith.addf %13, %12 : vector<12x128xf32>
    %15 = math.sqrt %14 : vector<12x128xf32>
    %cst_5 = arith.constant 5.000000e-01 : f32
    %16 = vector.broadcast %cst_5 : f32 to vector<12x128xf32>
    %17 = arith.subf %9, %16 : vector<12x128xf32>
    %18 = arith.mulf %17, %17 : vector<12x128xf32>
    %19 = vector.broadcast %7 : vector<12x1xf32> to vector<12x128xf32>
    %20 = arith.addf %19, %18 : vector<12x128xf32>
    %21 = math.sqrt %20 : vector<12x128xf32>
    %22 = arith.subf %15, %21 : vector<12x128xf32>
    %c0_6 = arith.constant 0 : index
    %c0_7 = arith.constant 0 : index
    %23 = vector.load %arg3[%c0_6, %c0_7] : memref<16x128xbf16, #tpu.memory_space<vmem>>, vector<16x128xbf16>
    %c0_8 = arith.constant 0 : index
    %c0_9 = arith.constant 0 : index
    %24 = vector.load %arg8[%c0_8, %c0_9] : memref<28x128xbf16, #tpu.memory_space<vmem>>, vector<16x128xbf16>
    tpu.vector_store %arg8[%c0_8, %c0_9], %23 {strides = array<i32>} : memref<28x128xbf16, #tpu.memory_space<vmem>>, vector<16x128xbf16>,
    %25 = arith.truncf %22 : vector<12x128xf32> to vector<12x128xbf16>
    %c16 = arith.constant 16 : index
    %c0_10 = arith.constant 0 : index
    %26 = vector.load %arg8[%c16, %c0_10] : memref<28x128xbf16, #tpu.memory_space<vmem>>, vector<12x128xbf16>
    tpu.vector_store %arg8[%c16, %c0_10], %25 {strides = array<i32>} : memref<28x128xbf16, #tpu.memory_space<vmem>>, vector<12x128xbf16>,
    %c0_11 = arith.constant 0 : index
    %c0_12 = arith.constant 0 : index
    %27 = vector.load %arg4[%c0_11, %c0_12] : memref<12x28xbf16, #tpu.memory_space<vmem>>, vector<12x28xbf16>
    %c0_13 = arith.constant 0 : index
    %c0_14 = arith.constant 0 : index
    %28 = vector.load %arg8[%c0_13, %c0_14] : memref<28x128xbf16, #tpu.memory_space<vmem>>, vector<28x128xbf16>
    %cst_15 = arith.constant dense<0.000000e+00> : vector<12x128xf32>
    %29 = tpu.matmul %27, %28, %cst_15 {dimension_numbers = #tpu.dot_dimension_numbers<[1], [0], [0], [1], [0, 0, 1, 1], [], []>} : vector<12x28xbf16>, vector<28x128xbf16>, vector<12x128xf32> -> vector<12x128xf32>
    %cst_16 = arith.constant 1.000000e+00 : f32
    %30 = vector.broadcast %cst_16 : f32 to vector<12x1xf32>
    %31 = arith.subf %30, %5 : vector<12x1xf32>
    %32 = vector.broadcast %31 : vector<12x1xf32> to vector<12x128xf32>
    %33 = arith.mulf %32, %3 : vector<12x128xf32>
    %34 = arith.addf %33, %29 : vector<12x128xf32>
    %c0_17 = arith.constant 0 : index
    %c0_18 = arith.constant 0 : index
    %35 = vector.load %arg6[%c0_17, %c0_18] : memref<12x128xf32, #tpu.memory_space<vmem>>, vector<12x128xf32>
    tpu.vector_store %arg6[%c0_17, %c0_18], %34 {strides = array<i32>} : memref<12x128xf32, #tpu.memory_space<vmem>>, vector<12x128xf32>,
    %c0_19 = arith.constant 0 : index
    %c0_20 = arith.constant 0 : index
    %36 = vector.load %arg2[%c0_19, %c0_20] : memref<12x128xf32, #tpu.memory_space<vmem>>, vector<12x128xf32>
    %37 = arith.subf %36, %34 : vector<12x128xf32>
    %c0_21 = arith.constant 0 : index
    %c0_22 = arith.constant 0 : index
    %38 = vector.load %arg7[%c0_21, %c0_22] : memref<1x1xf32, #tpu.memory_space<vmem>>, vector<1x1xf32>
    %39 = arith.mulf %37, %37 : vector<12x128xf32>
    %40 = vector.shape_cast %39 : vector<12x128xf32> to vector<1x12x128xf32>
    %cst_23 = arith.constant dense<0.000000e+00> : vector<1xf32>
    %41 = vector.multi_reduction <add>, %40, %cst_23 [1, 2] : vector<1x12x128xf32> to vector<1xf32>
    %42 = vector.shape_cast %41 : vector<1xf32> to vector<1x1x1xf32>
    %43 = vector.extract %42[0, 0, 0] : f32 from vector<1x1x1xf32>
    %44 = vector.broadcast %43 : f32 to vector<1x1xf32>
    %cst_24 = arith.constant 5.000000e-01 : f32
    %45 = vector.broadcast %cst_24 : f32 to vector<1x1xf32>
    %46 = arith.mulf %45, %44 : vector<1x1xf32>
    %47 = arith.addf %38, %46 : vector<1x1xf32>
    %c0_25 = arith.constant 0 : index
    %c0_26 = arith.constant 0 : index
    %48 = vector.load %arg7[%c0_25, %c0_26] : memref<1x1xf32, #tpu.memory_space<vmem>>, vector<1x1xf32>
    tpu.vector_store %arg7[%c0_25, %c0_26], %47 {strides = array<i32>} : memref<1x1xf32, #tpu.memory_space<vmem>>, vector<1x1xf32>,
    return
  }
  func.func @transform_0(%arg0: i32) -> (i32, i32) {
    %c0_i32 = arith.constant 0 : i32
    %c0_i32_0 = arith.constant 0 : i32
    return %c0_i32, %arg0 : i32, i32
  }
  func.func @transform_1(%arg0: i32) -> (i32, i32) {
    %c0_i32 = arith.constant 0 : i32
    %c0_i32_0 = arith.constant 0 : i32
    return %c0_i32, %arg0 : i32, i32
  }
  func.func @transform_2(%arg0: i32) -> (i32, i32) {
    %c0_i32 = arith.constant 0 : i32
    %c0_i32_0 = arith.constant 0 : i32
    return %c0_i32, %arg0 : i32, i32
  }
  func.func @transform_3(%arg0: i32) -> (i32, i32) {
    %c0_i32 = arith.constant 0 : i32
    %c0_i32_0 = arith.constant 0 : i32
    %c0_i32_1 = arith.constant 0 : i32
    return %c0_i32, %c0_i32_0 : i32, i32
  }
  func.func @transform_4(%arg0: i32) -> (i32, i32) {
    %c0_i32 = arith.constant 0 : i32
    %c0_i32_0 = arith.constant 0 : i32
    %c0_i32_1 = arith.constant 0 : i32
    return %c0_i32, %c0_i32_0 : i32, i32
  }
  func.func @transform_5(%arg0: i32) -> (i32, i32) {
    %c0_i32 = arith.constant 0 : i32
    %c0_i32_0 = arith.constant 0 : i32
    return %c0_i32, %arg0 : i32, i32
  }
  func.func @transform_6(%arg0: i32) -> (i32, i32) {
    %c0_i32 = arith.constant 0 : i32
    %c0_i32_0 = arith.constant 0 : i32
    %c0_i32_1 = arith.constant 0 : i32
    return %c0_i32, %c0_i32_0 : i32, i32
  }
}

</mosaic_0001>

<llo_original>
// kernel: mindy_forward.1
$region0: #{mindy_forward.1}
  #allocation0 [shape = 'u32[]', space=smem, size = 0x4, offset = 0x4, fixed_abs, tag = 'smem constant byte address 0x4 - core index']
  #allocation1 [shape = 'u32[144,128]{1,0:T(1,128)}', space=vmem, size = 0x12000, scoped, tag = 'internal scratch']
  #allocation2 [shape = 'bf16[28,128]{1,0:T(8,128)(2,1)}', space=vmem, size = 0x2000, scoped, tag = 'scratch operand']
  %s0 = inlined_call_operand.vmem [shape: f32[12,384], index: 0, kind: input, shape index: {}]
  %s1 = inlined_call_operand.vmem [shape: f32[12,384], index: 1, kind: input, shape index: {}]
  %s2 = inlined_call_operand.vmem [shape: bf16[16,384], index: 2, kind: input, shape index: {}]
  %s3 = inlined_call_operand.vmem [shape: bf16[12,28], index: 3, kind: input, shape index: {}]
  %s4 = inlined_call_operand.vmem [shape: f32[12,2], index: 4, kind: input, shape index: {}]
  %s5 = inlined_call_operand.hbm [shape: f32[12,384], index: 5, kind: output, shape index: {0}]
  %s6 = inlined_call_operand.hbm [shape: f32[1,1], index: 6, kind: output, shape index: {1}]
  %7 = xla_tuple %s5, %s6
  %s8 = sld [smem:[#allocation0]]
  $region182: #{mindy_forward.1} parent=0
    _
  %s10 = ssub.s32 1, %s8
  %s11 = scalar_select 0, %s10, %s8
  $region1: #{mindy_forward.1} parent=0
    #allocation3 [shape = 'u8[16384]{0}', space=vmem, size = 0x4000, scoped, tag = 'input window, operand 0']
    #allocation4 [shape = 'u8[16384]{0}', space=vmem, size = 0x4000, scoped, tag = 'input window, operand 1']
    #allocation5 [shape = 'u8[8192]{0}', space=vmem, size = 0x2000, scoped, tag = 'input window, operand 2']
    #allocation6 [shape = 'u8[16384]{0}', space=vmem, size = 0x4000, scoped, tag = 'output window, operand 0']
    #allocation7 [shape = 's32[2]{0}', space=sflag, size = 0x8, scoped, tag = 'scoped memory for mindy_forward.1']
    #allocation8 [shape = 'u8[512]{0}', space=vmem, size = 0x400, scoped, tag = 'output window, operand 1, single buffered']
    #allocation9 [shape = 's32[1]{0}', space=sflag, size = 0x4, scoped, tag = 'scoped memory for mindy_forward.1']
    %12 = vsyncpa [#allocation7], 0
    %s13 = scalar_lea.sflag [#allocation7], 1
    %14 = vsyncpa %s13, 0
    %15 = vsyncpa [#allocation9], 0
    loop: start=0, step=1, limit=5
    $region2: #{mindy_forward.1} parent=1 // loop_pre_header
      _
    $region3: #{mindy_forward.1} parent=1 // loop_header
      %s17 = sphi 0, %s21
      %p18 = scmp.ge.s32.totalorder %s17, 5
      %s27 = sphi 0, %s29
      %s30 = sphi 0, %s27
      %s31 = sphi 0, %s30
      %s47 = sphi 0, %s31
      %s53 = sphi 0, %s55
      %s56 = sphi 0, %s53
      %s57 = sphi 0, %s56
      %s73 = sphi 0, %s57
      %s79 = sphi 0, %s81
      %s82 = sphi 0, %s79
      %s83 = sphi 0, %s82
      %s99 = sphi 0, %s83
      %s103 = sphi 0, %s103
      %s105 = sphi 0, %s103
      %s106 = sphi 0, %s105
      %s120 = sphi 0, %s106
      %s124 = sphi 0, %s124
      %s126 = sphi 0, %s124
      %s127 = sphi 0, %s126
      %s141 = sphi 0, %s127
      %s147 = sphi 0, %s149
      %s150 = sphi 0, %s147
      %s151 = sphi 0, %s150
      %s167 = sphi 0, %s151
      %s171 = sphi 0, %s171
      %s173 = sphi 0, %s171
      %s174 = sphi 0, %s173
      %s188 = sphi 0, %s174
    $region4: #{mindy_forward.1} parent=1 // loop_header_branch
      %20 = sbr.rel (%p18) target = $region8
    $region5: #{mindy_forward.1} parent=1 // loop_body
      %s22 = ssub.s32 %s17, 1
      %s23 = ssub.s32 %s17, 2
      %s24 = sadd.s32 %s17, 1
      %s25 = ssub.s32 %s17, %s24
      %p26 = scmp.eq.s32.totalorder %s25, 0
      %s28 = sadd.s32 %s27, 1
      %s29 = scalar_select %p26, %s27, %s28
      %p32 = pneg %p26
      %p33 = scmp.eq.s32.totalorder %s17, 2
      %p34 = por %p32, %p33
      %p35 = scmp.ne.s32.totalorder %s27, %s30
      %p36 = scmp.eq.s32.totalorder %s17, 0
      %p37 = por %p35, %p36
      %p38 = scmp.ne.s32.totalorder %s27, %s30
      %p39 = scmp.eq.s32.totalorder %s22, 2
      %p40 = por %p38, %p39
      %p41 = scmp.ne.s32.totalorder %s30, %s31
      %p42 = scmp.eq.s32.totalorder %s22, 0
      %p43 = por %p41, %p42
      %p44 = scmp.ne.s32.totalorder %s30, %s31
      %p45 = scmp.eq.s32.totalorder %s23, 2
      %p46 = por %p44, %p45
      %p48 = scmp.ne.s32.totalorder %s31, %s47
      %p49 = scmp.eq.s32.totalorder %s23, 0
      %p50 = por %p48, %p49
      %s51 = ssub.s32 %s17, %s24
      %p52 = scmp.eq.s32.totalorder %s51, 0
      %s54 = sadd.s32 %s53, 1
      %s55 = scalar_select %p52, %s53, %s54
      %p58 = pneg %p52
      %p59 = scmp.eq.s32.totalorder %s17, 2
      %p60 = por %p58, %p59
      %p61 = scmp.ne.s32.totalorder %s53, %s56
      %p62 = scmp.eq.s32.totalorder %s17, 0
      %p63 = por %p61, %p62
      %p64 = scmp.ne.s32.totalorder %s53, %s56
      %p65 = scmp.eq.s32.totalorder %s22, 2
      %p66 = por %p64, %p65
      %p67 = scmp.ne.s32.totalorder %s56, %s57
      %p68 = scmp.eq.s32.totalorder %s22, 0
      %p69 = por %p67, %p68
      %p70 = scmp.ne.s32.totalorder %s56, %s57
      %p71 = scmp.eq.s32.totalorder %s23, 2
      %p72 = por %p70, %p71
      %p74 = scmp.ne.s32.totalorder %s57, %s73
      %p75 = scmp.eq.s32.totalorder %s23, 0
      %p76 = por %p74, %p75
      %s77 = ssub.s32 %s17, %s24
      %p78 = scmp.eq.s32.totalorder %s77, 0
      %s80 = sadd.s32 %s79, 1
      %s81 = scalar_select %p78, %s79, %s80
      %p84 = pneg %p78
      %p85 = scmp.eq.s32.totalorder %s17, 2
      %p86 = por %p84, %p85
      %p87 = scmp.ne.s32.totalorder %s79, %s82
      %p88 = scmp.eq.s32.totalorder %s17, 0
      %p89 = por %p87, %p88
      %p90 = scmp.ne.s32.totalorder %s79, %s82
      %p91 = scmp.eq.s32.totalorder %s22, 2
      %p92 = por %p90, %p91
      %p93 = scmp.ne.s32.totalorder %s82, %s83
      %p94 = scmp.eq.s32.totalorder %s22, 0
      %p95 = por %p93, %p94
      %p96 = scmp.ne.s32.totalorder %s82, %s83
      %p97 = scmp.eq.s32.totalorder %s23, 2
      %p98 = por %p96, %p97
      %p100 = scmp.ne.s32.totalorder %s83, %s99
      %p101 = scmp.eq.s32.totalorder %s23, 0
      %p102 = por %p100, %p101
      %s104 = sadd.s32 %s103, 1
      %p107 = scmp.eq.s32.totalorder %s17, 2
      %p108 = scmp.ne.s32.totalorder %s103, %s105
      %p109 = scmp.eq.s32.totalorder %s17, 0
      %p110 = por %p108, %p109
      %p111 = scmp.ne.s32.totalorder %s103, %s105
      %p112 = scmp.eq.s32.totalorder %s22, 2
      %p113 = por %p111, %p112
      %p114 = scmp.ne.s32.totalorder %s105, %s106
      %p115 = scmp.eq.s32.totalorder %s22, 0
      %p116 = por %p114, %p115
      %p117 = scmp.ne.s32.totalorder %s105, %s106
      %p118 = scmp.eq.s32.totalorder %s23, 2
      %p119 = por %p117, %p118
      %p121 = scmp.ne.s32.totalorder %s106, %s120
      %p122 = scmp.eq.s32.totalorder %s23, 0
      %p123 = por %p121, %p122
      %s125 = sadd.s32 %s124, 1
      %p128 = scmp.eq.s32.totalorder %s17, 2
      %p129 = scmp.ne.s32.totalorder %s124, %s126
      %p130 = scmp.eq.s32.totalorder %s17, 0
      %p131 = por %p129, %p130
      %p132 = scmp.ne.s32.totalorder %s124, %s126
      %p133 = scmp.eq.s32.totalorder %s22, 2
      %p134 = por %p132, %p133
      %p135 = scmp.ne.s32.totalorder %s126, %s127
      %p136 = scmp.eq.s32.totalorder %s22, 0
      %p137 = por %p135, %p136
      %p138 = scmp.ne.s32.totalorder %s126, %s127
      %p139 = scmp.eq.s32.totalorder %s23, 2
      %p140 = por %p138, %p139
      %p142 = scmp.ne.s32.totalorder %s127, %s141
      %p143 = scmp.eq.s32.totalorder %s23, 0
      %p144 = por %p142, %p143
      %s145 = ssub.s32 %s17, %s24
      %p146 = scmp.eq.s32.totalorder %s145, 0
      %s148 = sadd.s32 %s147, 1
      %s149 = scalar_select %p146, %s147, %s148
      %p152 = pneg %p146
      %p153 = scmp.eq.s32.totalorder %s17, 2
      %p154 = por %p152, %p153
      %p155 = scmp.ne.s32.totalorder %s147, %s150
      %p156 = scmp.eq.s32.totalorder %s17, 0
      %p157 = por %p155, %p156
      %p158 = scmp.ne.s32.totalorder %s147, %s150
      %p159 = scmp.eq.s32.totalorder %s22, 2
      %p160 = por %p158, %p159
      %p161 = scmp.ne.s32.totalorder %s150, %s151
      %p162 = scmp.eq.s32.totalorder %s22, 0
      %p163 = por %p161, %p162
      %p164 = scmp.ne.s32.totalorder %s150, %s151
      %p165 = scmp.eq.s32.totalorder %s23, 2
      %p166 = por %p164, %p165
      %p168 = scmp.ne.s32.totalorder %s151, %s167
      %p169 = scmp.eq.s32.totalorder %s23, 0
      %p170 = por %p168, %p169
      %s172 = sadd.s32 %s171, 1
      %p175 = scmp.eq.s32.totalorder %s17, 2
      %p176 = scmp.ne.s32.totalorder %s171, %s173
      %p177 = scmp.eq.s32.totalorder %s17, 0
      %p178 = por %p176, %p177
      %p179 = scmp.ne.s32.totalorder %s171, %s173
      %p180 = scmp.eq.s32.totalorder %s22, 2
      %p181 = por %p179, %p180
      %p182 = scmp.ne.s32.totalorder %s173, %s174
      %p183 = scmp.eq.s32.totalorder %s22, 0
      %p184 = por %p182, %p183
      %p185 = scmp.ne.s32.totalorder %s173, %s174
      %p186 = scmp.eq.s32.totalorder %s23, 2
      %p187 = por %p185, %p186
      %p189 = scmp.ne.s32.totalorder %s174, %s188
      %p190 = scmp.eq.s32.totalorder %s23, 0
      %p191 = por %p189, %p190
      %p192 = scmp.le.s32.totalorder 1, %s17
      %p193 = scmp.lt.s32.totalorder %s17, 4
      %p194 = pnand %p192, %p193
      %p195 = pneg %p194
      // Predicated region
      $region9: #{mindy_forward.1} parent=5 // pred_check
        _
      $region10: #{mindy_forward.1} parent=5 // pred_check_branch
        %197 = sbr.rel (%p194) target = $region12
      $region11: #{mindy_forward.1} parent=5 // pred_region
        %s198 = ssub.s32 %s17, 1
        // Predicated region
        $region13: #{mindy_forward.1} parent=11 // pred_check
          %p199 = pneg %p116
        $region14: #{mindy_forward.1} parent=11 // pred_check_branch
          %201 = sbr.rel (%p199) target = $region16
        $region15: #{mindy_forward.1} parent=11 // pred_region
          _
        $region16: #{mindy_forward.1} parent=11 // pred_fallthru
          _
        // Predicated region
        $region17: #{mindy_forward.1} parent=11 // pred_check
          %p202 = pneg %p137
        $region18: #{mindy_forward.1} parent=11 // pred_check_branch
          %204 = sbr.rel (%p202) target = $region20
        $region19: #{mindy_forward.1} parent=11 // pred_region
          _
        $region20: #{mindy_forward.1} parent=11 // pred_fallthru
          _
      $region12: #{mindy_forward.1} parent=5 // pred_fallthru
        _
      %p205 = scmp.lt.s32.totalorder %s17, 3
      // Predicated region
      $region21: #{mindy_forward.1} parent=5 // pred_check
        %p206 = pneg %p205
      $region22: #{mindy_forward.1} parent=5 // pred_check_branch
        %208 = sbr.rel (%p206) target = $region24
      $region23: #{mindy_forward.1} parent=5 // pred_region
        // Predicated region
        $region25: #{mindy_forward.1} parent=23 // pred_check
          %p209 = pneg %p37
        $region26: #{mindy_forward.1} parent=23 // pred_check_branch
          %211 = sbr.rel (%p209) target = $region28
        $region27: #{mindy_forward.1} parent=23 // pred_region
          %s212 = sand.u32 %s27, 1
          %s213 = sand.u32 %s27, 1
          %s214 = smul.addr %s213, 16
          %s215 = scalar_lea.vmem [#allocation3], %s214
          %s216 = smul.addr %s17, 8
          %s217 = scalar_lea.vmem %s0, %s216
          // Predicated region
          $region29: #{mindy_forward.1} parent=27 // pred_check
            _
          $region30: #{mindy_forward.1} parent=27 // pred_check_branch
            %219 = sbr.rel (0) target = $region32
          $region31: #{mindy_forward.1} parent=27 // pred_region
            // Predicated region
            $region33: #{mindy_forward.1} parent=31 // pred_check
              _
            $region34: #{mindy_forward.1} parent=31 // pred_check_branch
              %221 = sbr.rel (0) target = $region36
            $region35: #{mindy_forward.1} parent=31 // pred_region
              // Predicated region
              $region48: #{mindy_forward.1} parent=35 // pred_check
                _
              $region49: #{mindy_forward.1} parent=35 // pred_check_branch
                %238 = sbr.rel (0) target = $region51
              $region50: #{mindy_forward.1} parent=35 // pred_region
                loop: start=0, step=1, limit=1
                $region52: #{mindy_forward.1} parent=50 // loop_pre_header
                  _
                $region53: #{mindy_forward.1} parent=50 // loop_header
                  %s240 = sphi 0, %s244
                  %p241 = scmp.ge.s32.totalorder %s240, 1
                  %s245 = sphi %s217, %s217
                  %s246 = sphi %s215, %s215
                $region54: #{mindy_forward.1} parent=50 // loop_header_branch
                  %243 = sbr.rel (%p241) target = $region58
                $region55: #{mindy_forward.1} parent=50 // loop_body
                  %v247 = vld [vmem:[%s245] sm:$0xff]
                  %248 = vst [vmem:[%s246] sm:$0xff] %v247
                  %v249 = vld [vmem:[%s245 + $0x18] sm:$0xff]
                  %250 = vst [vmem:[%s246 + $0x8] sm:$0xff] %v249
                $region56: #{mindy_forward.1} parent=50 // loop_footer
                  %s244 = sadd.s32 1, %s240
                $region57: #{mindy_forward.1} parent=50 // loop_footer_branch
                  %239 = sbr.rel target = $region53
                $region58: #{mindy_forward.1} parent=50 // loop_exit
                  _
              $region51: #{mindy_forward.1} parent=35 // pred_fallthru
                _
              // Predicated region
              $region59: #{mindy_forward.1} parent=35 // pred_check
                _
              $region60: #{mindy_forward.1} parent=35 // pred_check_branch
                %252 = sbr.rel target = $region62
              $region61: #{mindy_forward.1} parent=35 // pred_region
                _
              $region62: #{mindy_forward.1} parent=35 // pred_fallthru
                _
            $region36: #{mindy_forward.1} parent=31 // pred_fallthru
              _
            // Predicated region
            $region37: #{mindy_forward.1} parent=31 // pred_check
              _
            $region38: #{mindy_forward.1} parent=31 // pred_check_branch
              %223 = sbr.rel target = $region40
            $region39: #{mindy_forward.1} parent=31 // pred_region
              loop: start=0, step=1, limit=1
              $region41: #{mindy_forward.1} parent=39 // loop_pre_header
                _
              $region42: #{mindy_forward.1} parent=39 // loop_header
                %s226 = sphi 0, %s230
                %p227 = scmp.ge.s32.totalorder %s226, 1
                %s231 = sphi %s217, %s217
                %s232 = sphi %s215, %s215
              $region43: #{mindy_forward.1} parent=39 // loop_header_branch
                %229 = sbr.rel (%p227) target = $region47
              $region44: #{mindy_forward.1} parent=39 // loop_body
                %v233 = vld [vmem:[%s231] sm:$0xff]
                %234 = vst [vmem:[%s232] sm:$0xff] %v233
                %v235 = vld [vmem:[%s231 + $0x18] sm:$0xff]
                %236 = vst [vmem:[%s232 + $0x8] sm:$0xff] %v235
              $region45: #{mindy_forward.1} parent=39 // loop_footer
                %s230 = sadd.s32 1, %s226
              $region46: #{mindy_forward.1} parent=39 // loop_footer_branch
                %225 = sbr.rel target = $region42
              $region47: #{mindy_forward.1} parent=39 // loop_exit
                _
            $region40: #{mindy_forward.1} parent=31 // pred_fallthru
              _
          $region32: #{mindy_forward.1} parent=27 // pred_fallthru
            _
          %253 = vnop
        $region28: #{mindy_forward.1} parent=23 // pred_fallthru
          _
        // Predicated region
        $region63: #{mindy_forward.1} parent=23 // pred_check
          %p254 = pneg %p63
        $region64: #{mindy_forward.1} parent=23 // pred_check_branch
          %256 = sbr.rel (%p254) target = $region66
        $region65: #{mindy_forward.1} parent=23 // pred_region
          %s257 = sand.u32 %s53, 1
          %s258 = sand.u32 %s53, 1
          %s259 = smul.addr %s258, 16
          %s260 = scalar_lea.vmem [#allocation4], %s259
          %s261 = smul.addr %s17, 8
          %s262 = scalar_lea.vmem %s1, %s261
          // Predicated region
          $region67: #{mindy_forward.1} parent=65 // pred_check
            _
          $region68: #{mindy_forward.1} parent=65 // pred_check_branch
            %264 = sbr.rel (0) target = $region70
          $region69: #{mindy_forward.1} parent=65 // pred_region
            // Predicated region
            $region71: #{mindy_forward.1} parent=69 // pred_check
              _
            $region72: #{mindy_forward.1} parent=69 // pred_check_branch
              %266 = sbr.rel (0) target = $region74
            $region73: #{mindy_forward.1} parent=69 // pred_region
              // Predicated region
              $region86: #{mindy_forward.1} parent=73 // pred_check
                _
              $region87: #{mindy_forward.1} parent=73 // pred_check_branch
                %283 = sbr.rel (0) target = $region89
              $region88: #{mindy_forward.1} parent=73 // pred_region
                loop: start=0, step=1, limit=1
                $region90: #{mindy_forward.1} parent=88 // loop_pre_header
                  _
                $region91: #{mindy_forward.1} parent=88 // loop_header
                  %s285 = sphi 0, %s289
                  %p286 = scmp.ge.s32.totalorder %s285, 1
                  %s290 = sphi %s262, %s262
                  %s291 = sphi %s260, %s260
                $region92: #{mindy_forward.1} parent=88 // loop_header_branch
                  %288 = sbr.rel (%p286) target = $region96
                $region93: #{mindy_forward.1} parent=88 // loop_body
                  %v292 = vld [vmem:[%s290] sm:$0xff]
                  %293 = vst [vmem:[%s291] sm:$0xff] %v292
                  %v294 = vld [vmem:[%s290 + $0x18] sm:$0xff]
                  %295 = vst [vmem:[%s291 + $0x8] sm:$0xff] %v294
                $region94: #{mindy_forward.1} parent=88 // loop_footer
                  %s289 = sadd.s32 1, %s285
                $region95: #{mindy_forward.1} parent=88 // loop_footer_branch
                  %284 = sbr.rel target = $region91
                $region96: #{mindy_forward.1} parent=88 // loop_exit
                  _
              $region89: #{mindy_forward.1} parent=73 // pred_fallthru
                _
              // Predicated region
              $region97: #{mindy_forward.1} parent=73 // pred_check
                _
              $region98: #{mindy_forward.1} parent=73 // pred_check_branch
                %297 = sbr.rel target = $region100
              $region99: #{mindy_forward.1} parent=73 // pred_region
                _
              $region100: #{mindy_forward.1} parent=73 // pred_fallthru
                _
            $region74: #{mindy_forward.1} parent=69 // pred_fallthru
              _
            // Predicated region
            $region75: #{mindy_forward.1} parent=69 // pred_check
              _
            $region76: #{mindy_forward.1} parent=69 // pred_check_branch
              %268 = sbr.rel target = $region78
            $region77: #{mindy_forward.1} parent=69 // pred_region
              loop: start=0, step=1, limit=1
              $region79: #{mindy_forward.1} parent=77 // loop_pre_header
                _
              $region80: #{mindy_forward.1} parent=77 // loop_header
                %s271 = sphi 0, %s275
                %p272 = scmp.ge.s32.totalorder %s271, 1
                %s276 = sphi %s262, %s262
                %s277 = sphi %s260, %s260
              $region81: #{mindy_forward.1} parent=77 // loop_header_branch
                %274 = sbr.rel (%p272) target = $region85
              $region82: #{mindy_forward.1} parent=77 // loop_body
                %v278 = vld [vmem:[%s276] sm:$0xff]
                %279 = vst [vmem:[%s277] sm:$0xff] %v278
                %v280 = vld [vmem:[%s276 + $0x18] sm:$0xff]
                %281 = vst [vmem:[%s277 + $0x8] sm:$0xff] %v280
              $region83: #{mindy_forward.1} parent=77 // loop_footer
                %s275 = sadd.s32 1, %s271
              $region84: #{mindy_forward.1} parent=77 // loop_footer_branch
                %270 = sbr.rel target = $region80
              $region85: #{mindy_forward.1} parent=77 // loop_exit
                _
            $region78: #{mindy_forward.1} parent=69 // pred_fallthru
              _
          $region70: #{mindy_forward.1} parent=65 // pred_fallthru
            _
          %298 = vnop
        $region66: #{mindy_forward.1} parent=23 // pred_fallthru
          _
        // Predicated region
        $region101: #{mindy_forward.1} parent=23 // pred_check
          %p299 = pneg %p89
        $region102: #{mindy_forward.1} parent=23 // pred_check_branch
          %301 = sbr.rel (%p299) target = $region104
        $region103: #{mindy_forward.1} parent=23 // pred_region
          %s302 = sand.u32 %s79, 1
          %s303 = sand.u32 %s79, 1
          %s304 = smul.addr %s303, 8
          %s305 = scalar_lea.vmem [#allocation5], %s304
          %s306 = smul.addr %s17, 4
          %s307 = scalar_lea.vmem %s2, %s306
          // Predicated region
          $region105: #{mindy_forward.1} parent=103 // pred_check
            _
          $region106: #{mindy_forward.1} parent=103 // pred_check_branch
            %309 = sbr.rel (0) target = $region108
          $region107: #{mindy_forward.1} parent=103 // pred_region
            // Predicated region
            $region109: #{mindy_forward.1} parent=107 // pred_check
              _
            $region110: #{mindy_forward.1} parent=107 // pred_check_branch
              %311 = sbr.rel target = $region112
            $region111: #{mindy_forward.1} parent=107 // pred_region
              // Predicated region
              $region124: #{mindy_forward.1} parent=111 // pred_check
                _
              $region125: #{mindy_forward.1} parent=111 // pred_check_branch
                %328 = sbr.rel (0) target = $region127
              $region126: #{mindy_forward.1} parent=111 // pred_region
                loop: start=0, step=1, limit=1
                $region128: #{mindy_forward.1} parent=126 // loop_pre_header
                  _
                $region129: #{mindy_forward.1} parent=126 // loop_header
                  %s330 = sphi 0, %s334
                  %p331 = scmp.ge.s32.totalorder %s330, 1
                  %s335 = sphi %s307, %s307
                  %s336 = sphi %s305, %s305
                $region130: #{mindy_forward.1} parent=126 // loop_header_branch
                  %333 = sbr.rel (%p331) target = $region134
                $region131: #{mindy_forward.1} parent=126 // loop_body
                  _
                $region132: #{mindy_forward.1} parent=126 // loop_footer
                  %s334 = sadd.s32 1, %s330
                $region133: #{mindy_forward.1} parent=126 // loop_footer_branch
                  %329 = sbr.rel target = $region129
                $region134: #{mindy_forward.1} parent=126 // loop_exit
                  _
                loop: start=0, step=1, limit=1
                $region135: #{mindy_forward.1} parent=126 // loop_pre_header
                  _
                $region136: #{mindy_forward.1} parent=126 // loop_header
                  %s339 = sphi 0, %s343
                  %p340 = scmp.ge.s32.totalorder %s339, 1
                  %s344 = sphi %s307, %s307
                  %s345 = sphi %s305, %s305
                $region137: #{mindy_forward.1} parent=126 // loop_header_branch
                  %342 = sbr.rel (%p340) target = $region141
                $region138: #{mindy_forward.1} parent=126 // loop_body
                  %v346 = vld [vmem:[%s344] sm:$0xf]
                  %347 = vst [vmem:[%s345] sm:$0xf] %v346
                  %v348 = vld [vmem:[%s344 + $0xc] sm:$0xf]
                  %349 = vst [vmem:[%s345 + $0x4] sm:$0xf] %v348
                $region139: #{mindy_forward.1} parent=126 // loop_footer
                  %s343 = sadd.s32 1, %s339
                $region140: #{mindy_forward.1} parent=126 // loop_footer_branch
                  %338 = sbr.rel target = $region136
                $region141: #{mindy_forward.1} parent=126 // loop_exit
                  _
              $region127: #{mindy_forward.1} parent=111 // pred_fallthru
                _
            $region112: #{mindy_forward.1} parent=107 // pred_fallthru
              _
            // Predicated region
            $region113: #{mindy_forward.1} parent=107 // pred_check
              _
            $region114: #{mindy_forward.1} parent=107 // pred_check_branch
              %313 = sbr.rel (0) target = $region116
            $region115: #{mindy_forward.1} parent=107 // pred_region
              loop: start=0, step=1, limit=1
              $region117: #{mindy_forward.1} parent=115 // loop_pre_header
                _
              $region118: #{mindy_forward.1} parent=115 // loop_header
                %s316 = sphi 0, %s320
                %p317 = scmp.ge.s32.totalorder %s316, 1
                %s321 = sphi %s307, %s307
                %s322 = sphi %s305, %s305
              $region119: #{mindy_forward.1} parent=115 // loop_header_branch
                %319 = sbr.rel (%p317) target = $region123
              $region120: #{mindy_forward.1} parent=115 // loop_body
                %v323 = vld [vmem:[%s321] sm:$0xf]
                %324 = vst [vmem:[%s322] sm:$0xf] %v323
                %v325 = vld [vmem:[%s321 + $0xc] sm:$0xf]
                %326 = vst [vmem:[%s322 + $0x4] sm:$0xf] %v325
              $region121: #{mindy_forward.1} parent=115 // loop_footer
                %s320 = sadd.s32 1, %s316
              $region122: #{mindy_forward.1} parent=115 // loop_footer_branch
                %315 = sbr.rel target = $region118
              $region123: #{mindy_forward.1} parent=115 // loop_exit
                _
            $region116: #{mindy_forward.1} parent=107 // pred_fallthru
              _
          $region108: #{mindy_forward.1} parent=103 // pred_fallthru
            _
          %350 = vnop
        $region104: #{mindy_forward.1} parent=23 // pred_fallthru
          _
      $region24: #{mindy_forward.1} parent=5 // pred_fallthru
        _
      %p351 = scmp.le.s32.totalorder 1, %s17
      %p352 = scmp.lt.s32.totalorder %s17, 4
      %p353 = pnand %p351, %p352
      %p354 = pneg %p353
      // Predicated region
      $region142: #{mindy_forward.1} parent=5 // pred_check
        _
      $region143: #{mindy_forward.1} parent=5 // pred_check_branch
        %356 = sbr.rel (%p353) target = $region145
      $region144: #{mindy_forward.1} parent=5 // pred_region
        %s357 = ssub.s32 %s17, 1
        %s358 = sand.u32 %s30, 1
        %s359 = sand.u32 %s30, 1
        %s360 = smul.addr %s359, 16
        %s361 = scalar_lea.vmem [#allocation3], %s360
        // Predicated region
        $region146: #{mindy_forward.1} parent=144 // pred_check
          %p362 = pneg %p43
        $region147: #{mindy_forward.1} parent=144 // pred_check_branch
          %364 = sbr.rel (%p362) target = $region149
        $region148: #{mindy_forward.1} parent=144 // pred_region
          _
        $region149: #{mindy_forward.1} parent=144 // pred_fallthru
          _
        %s365 = sand.u32 %s56, 1
        %s366 = sand.u32 %s56, 1
        %s367 = smul.addr %s366, 16
        %s368 = scalar_lea.vmem [#allocation4], %s367
        // Predicated region
        $region150: #{mindy_forward.1} parent=144 // pred_check
          %p369 = pneg %p69
        $region151: #{mindy_forward.1} parent=144 // pred_check_branch
          %371 = sbr.rel (%p369) target = $region153
        $region152: #{mindy_forward.1} parent=144 // pred_region
          _
        $region153: #{mindy_forward.1} parent=144 // pred_fallthru
          _
        %s372 = sand.u32 %s82, 1
        %s373 = sand.u32 %s82, 1
        %s374 = smul.addr %s373, 8
        %s375 = scalar_lea.vmem [#allocation5], %s374
        // Predicated region
        $region154: #{mindy_forward.1} parent=144 // pred_check
          %p376 = pneg %p95
        $region155: #{mindy_forward.1} parent=144 // pred_check_branch
          %378 = sbr.rel (%p376) target = $region157
        $region156: #{mindy_forward.1} parent=144 // pred_region
          _
        $region157: #{mindy_forward.1} parent=144 // pred_fallthru
          _
        %s379 = sand.u32 %s30, 1
        %s380 = sand.u32 %s30, 1
        %s381 = smul.addr %s380, 16
        %s382 = scalar_lea.vmem [#allocation3], %s381
        %p383 = pneg %p43
        %p384 = pneg %p40
        %s385 = sand.u32 %s56, 1
        %s386 = sand.u32 %s56, 1
        %s387 = smul.addr %s386, 16
        %s388 = scalar_lea.vmem [#allocation4], %s387
        %p389 = pneg %p69
        %p390 = pneg %p66
        %s391 = sand.u32 %s82, 1
        %s392 = sand.u32 %s82, 1
        %s393 = smul.addr %s392, 8
        %s394 = scalar_lea.vmem [#allocation5], %s393
        %p395 = pneg %p95
        %p396 = pneg %p92
        %p397 = pneg %p116
        %p398 = pneg %p113
        %p399 = pneg %p137
        %p400 = pneg %p134
        %p401 = pneg %p163
        %p402 = pneg %p160
        %s403 = sand.u32 %s150, 1
        %s404 = scalar_lea.sflag [#allocation7], %s403
        %s405 = sand.u32 %s150, 1
        %s406 = smul.addr %s405, 16
        %s407 = scalar_lea.vmem [#allocation6], %s406
        %p408 = pneg %p184
        %p409 = pneg %p181
        %p411 = scmp.eq.s32.totalorder %s22, 0
        // Predicated region
        $region158: #{mindy_forward.1} parent=144 // pred_check
          %p412 = pneg %p411
        $region159: #{mindy_forward.1} parent=144 // pred_check_branch
          %414 = sbr.rel (%p412) target = $region161
        $region160: #{mindy_forward.1} parent=144 // pred_region
          %vm415 = vcmask 0
          %416 = vst.msk [vmem:[#allocation8] sm:$0x1] %vm415, 0.0
        $region161: #{mindy_forward.1} parent=144 // pred_fallthru
          _
        %v417 = vld [vmem:[%s361] sm:$0xff]
        %v418 = vld [vmem:[%s361 + $0x8] sm:$0xf]
        %v419 = vld [vmem:[%s4] sm:$0xff]
        %v420 = vld [vmem:[%s4 + $0x8] sm:$0xf]
        %v421 = vmul.f32 %v419, %v419
        %v422 = vmul.f32 %v420, %v420
        %v423 = vmul.f32 %v417, 6.6666665
        %v424 = vmul.f32 %v418, 6.6666665
        %v425 = vadd.f32 %v423, 0.5
        %v426 = vadd.f32 %v424, 0.5
        %v427 = vmul.f32 %v425, %v425
        %v428 = vmul.f32 %v426, %v426
        %430 = vset.pattern.permute.xlu0 1
        %431 = vperm.xlu0 %430, %v421
        %v432 = vpop.permute.xlu0 %431
        %435 = vset.pattern.permute.xlu0 1
        %436 = vperm.xlu0 %435, %v422
        %v437 = vpop.permute.xlu0 %436
        %v439 = vadd.f32 %v432, %v427
        %v440 = vadd.f32 %v437, %v428
        %v441 = vrsqrt.pop %v439
        %v442 = vmul.f32 %v439, %v441
        %vm443 = vcmp.eq.f32.partialorder %v439, inf
        %v444 = vsel %vm443, %v439, %v442
        %vm445 = vcmp.eq.f32.partialorder %v439, 0.0
        %v446 = vand.u32 %v439, 2147483648
        %v447 = vsel %vm445, %v446, %v444
        %v448 = vrsqrt.pop %v440
        %v449 = vmul.f32 %v440, %v448
        %vm450 = vcmp.eq.f32.partialorder %v440, inf
        %v451 = vsel %vm450, %v440, %v449
        %vm452 = vcmp.eq.f32.partialorder %v440, 0.0
        %v453 = vand.u32 %v440, 2147483648
        %v454 = vsel %vm452, %v453, %v451
        %v455 = vsub.f32 %v423, 0.5
        %v456 = vsub.f32 %v424, 0.5
        %v457 = vmul.f32 %v455, %v455
        %v458 = vmul.f32 %v456, %v456
        %v459 = vadd.f32 %v432, %v457
        %v460 = vadd.f32 %v437, %v458
        %v461 = vrsqrt.pop %v459
        %v462 = vmul.f32 %v459, %v461
        %vm463 = vcmp.eq.f32.partialorder %v459, inf
        %v464 = vsel %vm463, %v459, %v462
        %vm465 = vcmp.eq.f32.partialorder %v459, 0.0
        %v466 = vand.u32 %v459, 2147483648
        %v467 = vsel %vm465, %v466, %v464
        %v468 = vrsqrt.pop %v460
        %v469 = vmul.f32 %v460, %v468
        %vm470 = vcmp.eq.f32.partialorder %v460, inf
        %v471 = vsel %vm470, %v460, %v469
        %vm472 = vcmp.eq.f32.partialorder %v460, 0.0
        %v473 = vand.u32 %v460, 2147483648
        %v474 = vsel %vm472, %v473, %v471
        %v475 = vsub.f32 %v447, %v467
        %v476 = vsub.f32 %v454, %v474
        %v477 = vld [vmem:[%s375] sm:$0xf]
        %v478 = vld [vmem:[%s375 + $0x4] sm:$0xf]
        %479 = vst [vmem:[#allocation2] sm:$0xf] %v477
        %480 = vst [vmem:[#allocation2 + $0x4] sm:$0xf] %v478
        %v481 = vpack.c.bf16 %v476, %v475
        %v483 = vunpack.c.l.b16 %v481
        %v484 = vunpack.c.h.b16 %v481
        %v485 = vpack.c.b16 %v483, %v483
        %v486 = vpack.c.b16 %v484, %v484
        %489 = vst [vmem:[#allocation2 + $0x8] sm:$0xf] %v485
        %490 = vst [vmem:[#allocation2 + $0xc] sm:$0x3] %v486
        %v491 = vld [vmem:[%s3] sm:$0xf]
        %v492 = vld [vmem:[%s3 + $0x4] sm:$0x3]
        %v493 = vld [vmem:[#allocation2] sm:$0xf]
        %v494 = vld [vmem:[#allocation2 + $0x4] sm:$0xf]
        %v495 = vld [vmem:[#allocation2 + $0x8] sm:$0xf]
        %v496 = vld [vmem:[#allocation2 + $0xc] sm:$0x3]
        %v499 = vunpack.c.l.b16 %v491
        %v500 = vunpack.c.l.b16 %v492
        %v501 = vpack.c.b16 %v500, %v499
        %v506 = vunpack.c.l.b16 %v493
        %v507 = vunpack.c.l.b16 %v494
        %v508 = vunpack.c.l.b16 %v495
        %v509 = vunpack.c.l.b16 %v496
        %v510 = vpack.c.b16 %v507, %v506
        %v511 = vpack.c.b16 %v509, %v508
        %vm513 = vcmask 228352
        %v515 = vsel %vm513, %v501, 0
        %vm517 = vcmask 1045504
        %v519 = vsel %vm517, %v511, 0
        %521 = vmatprep.subr.bf16.mxu0 0
        %522 = vmatpush1.bf16.msra.mxu0 %v510
        %523 = vmatprep.subr.bf16.mxu0 0
        %524 = vmatpush1.bf16.msra.mxu0 %v519
        %525 = vmatprep.subr.bf16.mxu0 0
        %526 = vmatpush1.bf16.msra.mxu0 0
        %527 = vmatprep.subr.bf16.mxu0 0
        %528 = vmatpush1.bf16.msra.mxu0 0
        %529 = vmatprep.subr.bf16.mxu0 0
        %530 = vmatpush1.bf16.msra.mxu0 0
        %531 = vmatprep.subr.bf16.mxu0 0
        %532 = vmatpush1.bf16.msra.mxu0 0
        %533 = vmatprep.subr.bf16.mxu0 0
        %534 = vmatpush1.bf16.msra.mxu0 0
        %535 = vmatprep.subr.bf16.mxu0 0
        %536 = vmatpush1.bf16.msra.mxu0 0
        %537 = vmatprep.subr.bf16.mxu0 0
        %538 = vmatpush1.bf16.msra.mxu0 0
        %539 = vmatprep.subr.bf16.mxu0 0
        %540 = vmatpush1.bf16.msra.mxu0 0
        %541 = vmatprep.subr.bf16.mxu0 0
        %542 = vmatpush1.bf16.msra.mxu0 0
        %543 = vmatprep.subr.bf16.mxu0 0
        %544 = vmatpush1.bf16.msra.mxu0 0
        %545 = vmatprep.subr.bf16.mxu0 0
        %546 = vmatpush1.bf16.msra.mxu0 0
        %547 = vmatprep.subr.bf16.mxu0 0
        %548 = vmatpush1.bf16.msra.mxu0 0
        %549 = vmatprep.subr.bf16.mxu0 0
        %550 = vmatpush1.bf16.msra.mxu0 0
        %551 = vmatprep.subr.bf16.mxu0 0
        %552 = vmatpush1.bf16.msra.mxu0 0
        %553 = vmatprep.mubr.bf16.mxu0 0
        %554 = vmatmul.mubr.bf16.gmra.mrb[0].mxu0 %v515
        %v555 = vpop.f32.mrb[0].mxu0
        %v556 = vadd.f32 0.0, %v555
        %v557 = vpop.f32.mrb[0].mxu0
        %v558 = vpop.f32.mrb[0].mxu0
        %v559 = vadd.f32 0.0, %v558
        %v560 = vpop.f32.mrb[0].mxu0
        %561 = vdwg.mxu0
        %v562 = vsub.f32 1.0, %v419
        %v563 = vsub.f32 1.0, %v420
        %565 = vset.pattern.permute.xlu0 0
        %566 = vperm.xlu0 %565, %v562
        %v567 = vpop.permute.xlu0 %566
        %570 = vset.pattern.permute.xlu0 0
        %571 = vperm.xlu0 %570, %v563
        %v572 = vpop.permute.xlu0 %571
        %v574 = vmul.f32 %v567, %v417
        %v575 = vmul.f32 %v572, %v418
        %v576 = vadd.f32 %v574, %v556
        %v577 = vadd.f32 %v575, %v559
        %578 = vst [vmem:[%s407] sm:$0xff] %v576
        %579 = vst [vmem:[%s407 + $0x8] sm:$0xf] %v577
        %v580 = vld [vmem:[%s368] sm:$0xff]
        %v581 = vld [vmem:[%s368 + $0x8] sm:$0xf]
        %v582 = vsub.f32 %v580, %v576
        %v583 = vsub.f32 %v581, %v577
        %v584 = vld [vmem:[#allocation8] sm:$0x1]
        %v585 = vmul.f32 %v582, %v582
        %v586 = vmul.f32 %v583, %v583
        %vm587 = vcmask 1043456
        %v588 = vsel %vm587, %v586, 0.0
        %v589 = vadd.f32 %v585, %v588
        %590 = vadd.xlane.f32.xlu0 %v589
        %v591 = vpop.xlane.xlu0 %590
        %v592 = vrot.slane %v591, 4
        %v593 = vadd.f32 %v591, %v592
        %v594 = vrot.slane %v593, 2
        %v595 = vadd.f32 %v593, %v594
        %v596 = vrot.slane %v595, 1
        %v597 = vadd.f32 %v595, %v596
        %s598 = vtos %v597
        %v599 = vstv %s598
        %v600 = vmul.f32 %v599, 0.5
        %v601 = vadd.f32 %v584, %v600
        %vm602 = vcmask 0
        %603 = vst.msk [vmem:[#allocation8] sm:$0x1] %vm602, %v601
        %s604 = sand.u32 %s150, 1
        %s605 = scalar_lea.sflag [#allocation7], %s604
        %s606 = sand.u32 %s150, 1
        %s607 = smul.addr %s606, 16
        %s608 = scalar_lea.vmem [#allocation6], %s607
        // Predicated region
        $region162: #{mindy_forward.1} parent=144 // pred_check
          %p609 = pneg %p160
        $region163: #{mindy_forward.1} parent=144 // pred_check_branch
          %611 = sbr.rel (%p609) target = $region165
        $region164: #{mindy_forward.1} parent=144 // pred_region
          %s613 = ssub.s32 256, 256
          %614 = vsyncadd %s605, %s613
          %s615 = smul.addr %s22, 128
          %s616 = scalar_lea.hbm %s5, %s615
          %s617 = sshll.u32 %s608, 4
          %s618 = int_to_ptr.vmem [resolvable:$true] %s617
          %623 = dma.vmem_to_hbm [thread:$0]  %s618, 256, %s616, %s605, 128, 384, 8
        $region165: #{mindy_forward.1} parent=144 // pred_fallthru
          _
        // Predicated region
        $region166: #{mindy_forward.1} parent=144 // pred_check
          %p624 = pneg %p181
        $region167: #{mindy_forward.1} parent=144 // pred_check_branch
          %626 = sbr.rel (%p624) target = $region169
        $region168: #{mindy_forward.1} parent=144 // pred_region
          %s628 = ssub.s32 16, 16
          %629 = vsyncadd [#allocation9], %s628
          %s631 = sshll.u32 [#allocation8], 4
          %s632 = int_to_ptr.vmem [resolvable:$true] %s631
          %634 = dma.vmem_to_hbm [thread:$0]  %s632, 16, %s6, [#allocation9]
        $region169: #{mindy_forward.1} parent=144 // pred_fallthru
          _
        // Predicated region
        $region170: #{mindy_forward.1} parent=144 // pred_check
          %p635 = pneg %p181
        $region171: #{mindy_forward.1} parent=144 // pred_check_branch
          %637 = sbr.rel (%p635) target = $region173
        $region172: #{mindy_forward.1} parent=144 // pred_region
          %638 = dma.done [#allocation9], 16
        $region173: #{mindy_forward.1} parent=144 // pred_fallthru
          _
      $region145: #{mindy_forward.1} parent=5 // pred_fallthru
        _
      %p639 = scmp.le.s32.totalorder 2, %s17
      // Predicated region
      $region174: #{mindy_forward.1} parent=5 // pred_check
        %p640 = pneg %p639
      $region175: #{mindy_forward.1} parent=5 // pred_check_branch
        %642 = sbr.rel (%p640) target = $region177
      $region176: #{mindy_forward.1} parent=5 // pred_region
        %s643 = ssub.s32 %s17, 2
        // Predicated region
        $region178: #{mindy_forward.1} parent=176 // pred_check
          %p644 = pneg %p166
        $region179: #{mindy_forward.1} parent=176 // pred_check_branch
          %646 = sbr.rel (%p644) target = $region181
        $region180: #{mindy_forward.1} parent=176 // pred_region
          %s647 = sand.u32 %s151, 1
          %s648 = scalar_lea.sflag [#allocation7], %s647
          %s649 = sand.u32 %s151, 1
          %s650 = smul.addr %s649, 16
          %s651 = scalar_lea.vmem [#allocation6], %s650
          %652 = dma.done %s648, 256
        $region181: #{mindy_forward.1} parent=176 // pred_fallthru
          _
      $region177: #{mindy_forward.1} parent=5 // pred_fallthru
        _
    $region6: #{mindy_forward.1} parent=1 // loop_footer
      %s21 = sadd.s32 1, %s17
    $region7: #{mindy_forward.1} parent=1 // loop_footer_branch
      %16 = sbr.rel target = $region3
    $region8: #{mindy_forward.1} parent=1 // loop_exit
      _
    %653 = vsyncpa [#allocation7], 1
    %s654 = scalar_lea.sflag [#allocation7], 1
    %655 = vsyncpa %s654, 1
    %656 = vsyncpa [#allocation9], 1

</llo_original>
